<compile_context>
chip_gen: v7x
topology: tpu7x:2x2x1
jax: 0.10.0
libtpu: 0.0.40
codegen_flags: <defaults>
</compile_context>

<pallas_src>
import functools

import jax
import jax.numpy as jnp
from jax.experimental import pallas as pl
from jax.experimental.pallas import tpu as pltpu

_NEG_BIG = -1e30  # finite mask value: avoids -inf arithmetic / NaN on isolated rows


def _round_up(x, m):
    return (x + m - 1) // m * m


def _proj_kernel(inp_ref, w_ref, b_ref, out_ref):
    # x_ext = inp @ W_ext + b_ext  (projection + folded attention projections)
    out_ref[...] = (
        jnp.dot(inp_ref[...], w_ref[...], preferred_element_type=jnp.float32)
        + b_ref[...])


def _attn_kernel(xi_ref, xjt_ref, x_ref, adj_ref, out_ref, *,
                 num_heads, out_dim, is_intermediate):
    neigh = adj_ref[...] != 0            # (TM, Np) bool mask, computed once
    xi = xi_ref[...]                     # (TM, H)       query-side logits
    xjt = xjt_ref[...]                   # (H, Np)       neighbour-side logits
    x = x_ref[...]                       # (Np, H*F_out) projected node features

    acc = None
    for h in range(num_heads):           # H is small & static -> unrolled
        # logits: sim[i, j] = x_i[i, h] + x_j[j, h], masked where adj == 0
        sim = xi[:, h:h + 1] + xjt[h:h + 1, :]                     # (TM, Np)
        sim = jnp.where(neigh, sim, jnp.float32(_NEG_BIG))
        # leaky_relu (negative_slope = 0.01, PyTorch default)
        sim = jnp.where(sim >= 0, sim, sim * jnp.float32(0.01))
        # softmax over neighbours j, normalised *after* the value matmul
        m = jnp.max(sim, axis=1, keepdims=True)                    # (TM, 1)
        e = jnp.exp(sim - m)                                       # (TM, Np)
        denom = jnp.sum(e, axis=1, keepdims=True)                  # (TM, 1)
        xh = x[:, h * out_dim:(h + 1) * out_dim]                   # (Np, F_out)
        # TODO(synk): F.dropout(p=0.6) on the attention scores is stochastic;
        # eval mode (identity) is implemented here.
        oh = jnp.dot(e, xh, preferred_element_type=jnp.float32)    # (TM, F_out)
        oh = oh * pl.reciprocal(denom)                             # (TM, F_out)
        if is_intermediate:
            out_ref[:, h * out_dim:(h + 1) * out_dim] = oh         # direct slice write
        else:
            acc = oh if acc is None else acc + oh

    if not is_intermediate:
        out_ref[...] = acc * jnp.float32(1.0 / num_heads)


def gat_forward(inp, w, b, attn_w, adj, *, num_heads, out_dim,
                is_intermediate=True, row_tile=128, vmem_limit_bytes=None):
    """GAT forward (eval mode).

    inp:    (N, F_in)            float
    w:      (H*F_out, F_in)      nn.Linear weight layout
    b:      (H*F_out,)
    attn_w: (2*F_out, H)
    adj:    (N, N) any float dtype, 0 => no edge (bf16 recommended: 0/1 is
            exact and it halves the dominant N^2 HBM stream).
    """
    n, f_in = inp.shape
    hf = num_heads * out_dim
    out_cols = hf if is_intermediate else out_dim
    inp = inp.astype(jnp.float32)

    # ---- fold the attention projections a_i / a_j into the weight matrix ----
    w_t = w.T.astype(jnp.float32)                        # (F_in, H*F_out)
    a_i = attn_w[:out_dim, :].astype(jnp.float32)        # (F_out, H)
    a_j = attn_w[out_dim:, :].astype(jnp.float32)        # (F_out, H)
    w3 = w_t.reshape(f_in, num_heads, out_dim)
    w_ai = jnp.einsum("fhd,dh->fh", w3, a_i)             # (F_in, H)
    w_aj = jnp.einsum("fhd,dh->fh", w3, a_j)             # (F_in, H)
    b32 = b.astype(jnp.float32)
    b3 = b32.reshape(num_heads, out_dim)
    b_ai = jnp.einsum("hd,dh->h", b3, a_i)               # (H,)
    b_aj = jnp.einsum("hd,dh->h", b3, a_j)               # (H,)
    w_ext = jnp.concatenate([w_t, w_ai, w_aj], axis=1)   # (F_in, C)
    b_ext = jnp.concatenate([b32, b_ai, b_aj]).reshape(1, -1)
    c = hf + 2 * num_heads

    # ---- choose the query-row tile and pad the node axis to a multiple of it ----
    if n <= row_tile:
        tm = _round_up(n, 8)
        np_ = tm
    else:
        tm = row_tile                                    # multiple of 16 (bf16-safe)
        np_ = _round_up(n, tm)
    if np_ != n:
        inp = jnp.pad(inp, ((0, np_ - n), (0, 0)))
        adj = jnp.pad(adj, ((0, np_ - n), (0, np_ - n)))
    num_tiles = np_ // tm

    compiler_kwargs = dict(dimension_semantics=("parallel",))
    if vmem_limit_bytes is not None:
        # For large N (esp. v5e's 16 MiB default scoped VMEM) raise this.
        compiler_kwargs["vmem_limit_bytes"] = int(vmem_limit_bytes)
    cparams = pltpu.CompilerParams(**compiler_kwargs)

    # ---- kernel 1: projection (row-tiled) ----
    x_ext = pl.pallas_call(
        _proj_kernel,
        out_shape=jax.ShapeDtypeStruct((np_, c), jnp.float32),
        grid=(num_tiles,),
        in_specs=[
            pl.BlockSpec((tm, f_in), lambda i: (i, 0)),
            pl.BlockSpec((f_in, c), lambda i: (0, 0)),
            pl.BlockSpec((1, c), lambda i: (0, 0)),
        ],
        out_specs=pl.BlockSpec((tm, c), lambda i: (i, 0)),
        compiler_params=cparams,
    )(inp, w_ext, b_ext)

    x = x_ext[:, :hf]                       # (Np, H*F_out) projected features
    xi = x_ext[:, hf:hf + num_heads]        # (Np, H)       query-side logits
    xjt = x_ext[:, hf + num_heads:].T       # (H, Np)       neighbour-side logits

    # ---- kernel 2: masked multi-head attention (row-tiled over query nodes) ----
    kernel = functools.partial(_attn_kernel, num_heads=num_heads,
                               out_dim=out_dim, is_intermediate=is_intermediate)
    out = pl.pallas_call(
        kernel,
        out_shape=jax.ShapeDtypeStruct((np_, out_cols), jnp.float32),
        grid=(num_tiles,),
        in_specs=[
            pl.BlockSpec((tm, num_heads), lambda i: (i, 0)),   # x_i  (row tile)
            pl.BlockSpec((num_heads, np_), lambda i: (0, 0)),  # x_j^T (resident)
            pl.BlockSpec((np_, hf), lambda i: (0, 0)),         # x     (resident)
            pl.BlockSpec((tm, np_), lambda i: (i, 0)),         # adj   (row tile)
        ],
        out_specs=pl.BlockSpec((tm, out_cols), lambda i: (i, 0)),
        compiler_params=cparams,
    )(xi, xjt, x, adj)

    if np_ != n:
        out = out[:n]
    return out


def ref_forward(inp, w, b, attn_w, adj, *, num_heads, out_dim,
                is_intermediate=True):
    """Pure-JAX mirror of the PyTorch forward (eval mode)."""
    n = inp.shape[0]
    x = inp @ w.T + b
    x3 = x.reshape(n, num_heads, out_dim)
    a_i = attn_w[:out_dim, :]                       # (F_out, H)
    a_j = attn_w[out_dim:, :]
    x_i = jnp.sum(x3 * a_i.T[None], axis=-1)        # (N, H)
    x_j = jnp.sum(x3 * a_j.T[None], axis=-1)        # (N, H)
    sim = x_i[:, None, :] + x_j[None, :, :]         # (N, N, H)
    mask = jnp.where(adj.astype(jnp.float32) == 0.0, -jnp.inf, 0.0)
    sim = sim + mask[:, :, None]
    sim = jnp.where(sim >= 0, sim, 0.01 * sim)
    attn = jax.nn.softmax(sim, axis=1)
    out = jnp.einsum("ijh,jhd->hid", attn, x3)      # (H, N, F_out)
    if is_intermediate:
        out = out.transpose(1, 0, 2).reshape(n, num_heads * out_dim)
    else:
        out = jnp.mean(out, axis=0)
    return out


def _make_inputs(key, n, in_dim, out_dim, heads):
    k_in, k_w, k_b, k_a, k_adj = jax.random.split(key, 5)
    inp = jax.random.normal(k_in, (n, in_dim), dtype=jnp.float32)
    w = jax.random.normal(k_w, (out_dim * heads, in_dim), dtype=jnp.float32) * 0.1
    b = jax.random.normal(k_b, (out_dim * heads,), dtype=jnp.float32) * 0.1
    attn_w = jax.random.normal(k_a, (2 * out_dim, heads), dtype=jnp.float32)
    adj = (jax.random.uniform(k_adj, (n, n)) > 0.5).astype(jnp.float32)
    adj = jnp.maximum(adj, jnp.eye(n, dtype=jnp.float32))  # self-loops
    return inp, w, b, attn_w, adj


if __name__ == "__main__":
    key = jax.random.PRNGKey(0)
    cases = [
        # (N, F_in, F_out, H, is_intermediate)
        (8, 32, 8, 4, True),    # heads concatenated
        (8, 32, 8, 4, False),   # heads averaged
        (12, 32, 8, 4, True),   # exercises the row-padding path
    ]
    for idx, (n, f_in, f_out, heads, inter) in enumerate(cases):
        inp, w, b, attn_w, adj = _make_inputs(
            jax.random.fold_in(key, idx), n, f_in, f_out, heads)
        # Adjacency stored narrow in HBM (bf16 represents 0/1 exactly); the
        # kernel only compares it against zero.
        out = gat_forward(inp, w, b, attn_w, adj.astype(jnp.bfloat16),
                          num_heads=heads, out_dim=f_out, is_intermediate=inter)
        out = jax.block_until_ready(out)
        ref = ref_forward(inp, w, b, attn_w, adj,
                          num_heads=heads, out_dim=f_out, is_intermediate=inter)
        expect_cols = heads * f_out if inter else f_out
        assert out.shape == (n, expect_cols), (out.shape, expect_cols)
        err = float(jnp.max(jnp.abs(out - ref)))
        assert jnp.allclose(out, ref, rtol=1e-4, atol=1e-4), (
            f"case {idx}: max abs err {err}")
    print("KERNEL_OK")
</pallas_src>

<mosaic_0001>
module attributes {stable_mosaic.version = 11 : i64} {
  func.func @_proj_kernel(%arg0: i32, %arg1: memref<8x32xf32, #tpu.memory_space<vmem>>, %arg2: memref<32x40xf32, #tpu.memory_space<vmem>>, %arg3: memref<1x40xf32, #tpu.memory_space<vmem>>, %arg4: memref<8x40xf32, #tpu.memory_space<vmem>>) attributes {dimension_semantics = [#tpu.dimension_semantics<parallel>], iteration_bounds = array<i64: 1>, scalar_prefetch = 0 : i64, scratch_operands = 0 : i64, tpu.core_type = #tpu.core_type<tc>, window_params = [{transform_indices = @transform_0, window_bounds = array<i64: 8, 32>}, {pipeline_mode = #tpu.pipeline_mode<synchronous>, transform_indices = @transform_1, window_bounds = array<i64: 32, 40>}, {pipeline_mode = #tpu.pipeline_mode<synchronous>, transform_indices = @transform_2, window_bounds = array<i64: 1, 40>}, {transform_indices = @transform_3, window_bounds = array<i64: 8, 40>}]} {
    %c0 = arith.constant 0 : index
    %c0_0 = arith.constant 0 : index
    %0 = vector.load %arg1[%c0, %c0_0] : memref<8x32xf32, #tpu.memory_space<vmem>>, vector<8x32xf32>
    %c0_1 = arith.constant 0 : index
    %c0_2 = arith.constant 0 : index
    %1 = vector.load %arg2[%c0_1, %c0_2] : memref<32x40xf32, #tpu.memory_space<vmem>>, vector<32x40xf32>
    %cst = arith.constant dense<0.000000e+00> : vector<8x40xf32>
    %2 = tpu.matmul %0, %1, %cst {dimension_numbers = #tpu.dot_dimension_numbers<[1], [0], [0], [1], [0, 0, 1, 1], [], []>} : vector<8x32xf32>, vector<32x40xf32>, vector<8x40xf32> -> vector<8x40xf32>
    %c0_3 = arith.constant 0 : index
    %c0_4 = arith.constant 0 : index
    %3 = vector.load %arg3[%c0_3, %c0_4] : memref<1x40xf32, #tpu.memory_space<vmem>>, vector<1x40xf32>
    %4 = vector.broadcast %3 : vector<1x40xf32> to vector<8x40xf32>
    %5 = arith.addf %2, %4 : vector<8x40xf32>
    %c0_5 = arith.constant 0 : index
    %c0_6 = arith.constant 0 : index
    %6 = vector.load %arg4[%c0_5, %c0_6] : memref<8x40xf32, #tpu.memory_space<vmem>>, vector<8x40xf32>
    tpu.vector_store %arg4[%c0_5, %c0_6], %5 {strides = array<i32>} : memref<8x40xf32, #tpu.memory_space<vmem>>, vector<8x40xf32>,
    return
  }
  func.func @transform_0(%arg0: i32) -> (i32, i32) {
    %c0_i32 = arith.constant 0 : i32
    %c0_i32_0 = arith.constant 0 : i32
    return %arg0, %c0_i32 : i32, i32
  }
  func.func @transform_1(%arg0: i32) -> (i32, i32) {
    %c0_i32 = arith.constant 0 : i32
    %c0_i32_0 = arith.constant 0 : i32
    %c0_i32_1 = arith.constant 0 : i32
    return %c0_i32, %c0_i32_0 : i32, i32
  }
  func.func @transform_2(%arg0: i32) -> (i32, i32) {
    %c0_i32 = arith.constant 0 : i32
    %c0_i32_0 = arith.constant 0 : i32
    %c0_i32_1 = arith.constant 0 : i32
    return %c0_i32, %c0_i32_0 : i32, i32
  }
  func.func @transform_3(%arg0: i32) -> (i32, i32) {
    %c0_i32 = arith.constant 0 : i32
    %c0_i32_0 = arith.constant 0 : i32
    return %arg0, %c0_i32 : i32, i32
  }
}

</mosaic_0001>

<llo_original>
// kernel: tpu_custom_call.1
$region0: #{tpu_custom_call.1}
  #allocation0 [shape = 'u32[]', space=smem, size = 0x4, offset = 0x4, fixed_abs, tag = 'smem constant byte address 0x4 - core index']
  #allocation1 [shape = 'u32[144,128]{1,0:T(1,128)}', space=vmem, size = 0x12000, scoped, tag = 'internal scratch']
  %s0 = inlined_call_operand.hbm [shape: f32[8,32], index: 0, kind: input, shape index: {}]
  %s1 = inlined_call_operand.hbm [shape: f32[32,40], index: 1, kind: input, shape index: {}]
  %s2 = inlined_call_operand.vmem [shape: f32[1,40], index: 2, kind: input, shape index: {}]
  %s3 = inlined_call_operand.hbm [shape: f32[8,40], index: 3, kind: output, shape index: {}]
  %s4 = sld [smem:[#allocation0]]
  $region30: #{tpu_custom_call.1} parent=0
    _
  %s6 = ssub.s32 1, %s4
  %s7 = scalar_select 0, %s6, %s4
  $region1: #{tpu_custom_call.1} parent=0
    #allocation2 [shape = 'u8[4096]{0}', space=vmem, size = 0x1000, scoped, tag = 'input window, operand 0, single buffered']
    #allocation3 [shape = 's32[1]{0}', space=sflag, size = 0x4, scoped, tag = 'scoped memory for tpu_custom_call.1']
    #allocation4 [shape = 's32[1]{0}', space=sflag, size = 0x4, scoped, tag = 'scoped memory for tpu_custom_call.1']
    #allocation5 [shape = 'u8[16384]{0}', space=vmem, size = 0x4000, scoped, tag = 'input window, operand 1, single buffered']
    #allocation6 [shape = 's32[1]{0}', space=sflag, size = 0x4, scoped, tag = 'scoped memory for tpu_custom_call.1']
    #allocation7 [shape = 'u8[4096]{0}', space=vmem, size = 0x1000, scoped, tag = 'output window, operand 0, single buffered']
    %8 = vsyncpa [#allocation3], 0
    %9 = vsyncpa [#allocation6], 0
    %10 = vsyncpa [#allocation4], 0
    // Predicated region
    $region2: #{tpu_custom_call.1} parent=1 // pred_check
      _
    $region3: #{tpu_custom_call.1} parent=1 // pred_check_branch
      %12 = sbr.rel (0) target = $region5
    $region4: #{tpu_custom_call.1} parent=1 // pred_region
      %s14 = ssub.s32 128, 128
      %15 = vsyncadd [#allocation3], %s14
      %s17 = sshll.u32 [#allocation2], 4
      %s18 = int_to_ptr.vmem [resolvable:$true] %s17
      %20 = dma.hbm_to_vmem [thread:$0]  %s0, 128, %s18, [#allocation3]
    $region5: #{tpu_custom_call.1} parent=1 // pred_fallthru
      _
    // Predicated region
    $region6: #{tpu_custom_call.1} parent=1 // pred_check
      _
    $region7: #{tpu_custom_call.1} parent=1 // pred_check_branch
      %22 = sbr.rel (0) target = $region9
    $region8: #{tpu_custom_call.1} parent=1 // pred_region
      %s24 = ssub.s32 512, 512
      %25 = vsyncadd [#allocation6], %s24
      %s26 = sshll.u32 [#allocation5], 4
      %s27 = int_to_ptr.vmem [resolvable:$true] %s26
      %32 = dma.hbm_to_vmem [thread:$0]  %s1, 512, %s27, [#allocation6], 128, 128, 8
    $region9: #{tpu_custom_call.1} parent=1 // pred_fallthru
      _
    // Predicated region
    $region10: #{tpu_custom_call.1} parent=1 // pred_check
      _
    $region11: #{tpu_custom_call.1} parent=1 // pred_check_branch
      %34 = sbr.rel (0) target = $region13
    $region12: #{tpu_custom_call.1} parent=1 // pred_region
      _
    $region13: #{tpu_custom_call.1} parent=1 // pred_fallthru
      _
    // Predicated region
    $region14: #{tpu_custom_call.1} parent=1 // pred_check
      _
    $region15: #{tpu_custom_call.1} parent=1 // pred_check_branch
      %36 = sbr.rel (0) target = $region17
    $region16: #{tpu_custom_call.1} parent=1 // pred_region
      %37 = dma.done [#allocation3], 128
    $region17: #{tpu_custom_call.1} parent=1 // pred_fallthru
      _
    // Predicated region
    $region18: #{tpu_custom_call.1} parent=1 // pred_check
      _
    $region19: #{tpu_custom_call.1} parent=1 // pred_check_branch
      %39 = sbr.rel (0) target = $region21
    $region20: #{tpu_custom_call.1} parent=1 // pred_region
      %40 = dma.done [#allocation6], 512
    $region21: #{tpu_custom_call.1} parent=1 // pred_fallthru
      _
    %v41 = vld [vmem:[#allocation2] sm:$0xff]
    %v42 = vld [vmem:[#allocation5] sm:$0xff]
    %v43 = vld [vmem:[#allocation5 + $0x8] sm:$0xff]
    %v44 = vld [vmem:[#allocation5 + $0x10] sm:$0xff]
    %v45 = vld [vmem:[#allocation5 + $0x18] sm:$0xff]
    %v46 = vld [vmem:[%s2] sm:$0x1]
    %v48 = vlaneseq
    %v49 = vshrl.u32 %v48, 7
    %v50 = vsub.s32 0, %v49
    %v51 = vrot.slane %v46, %v50
    %vm53 = vcmask 261120
    %v55 = vsel %vm53, %v41, 0
    %57 = vmatprep.subr.mxu0 0.0
    %58 = vmatpush1.msra.mxu0 %v42
    %59 = vmatprep.subr.mxu0 0.0
    %60 = vmatpush1.msra.mxu0 %v43
    %61 = vmatprep.subr.mxu0 0.0
    %62 = vmatpush1.msra.mxu0 %v44
    %63 = vmatprep.subr.mxu0 0.0
    %64 = vmatpush1.msra.mxu0 %v45
    %65 = vmatprep.subr.mxu0 0.0
    %66 = vmatpush1.msra.mxu0 0.0
    %67 = vmatprep.subr.mxu0 0.0
    %68 = vmatpush1.msra.mxu0 0.0
    %69 = vmatprep.subr.mxu0 0.0
    %70 = vmatpush1.msra.mxu0 0.0
    %71 = vmatprep.subr.mxu0 0.0
    %72 = vmatpush1.msra.mxu0 0.0
    %73 = vmatprep.subr.mxu0 0.0
    %74 = vmatpush1.msra.mxu0 0.0
    %75 = vmatprep.subr.mxu0 0.0
    %76 = vmatpush1.msra.mxu0 0.0
    %77 = vmatprep.subr.mxu0 0.0
    %78 = vmatpush1.msra.mxu0 0.0
    %79 = vmatprep.subr.mxu0 0.0
    %80 = vmatpush1.msra.mxu0 0.0
    %81 = vmatprep.subr.mxu0 0.0
    %82 = vmatpush1.msra.mxu0 0.0
    %83 = vmatprep.subr.mxu0 0.0
    %84 = vmatpush1.msra.mxu0 0.0
    %85 = vmatprep.subr.mxu0 0.0
    %86 = vmatpush1.msra.mxu0 0.0
    %87 = vmatprep.subr.mxu0 0.0
    %88 = vmatpush1.msra.mxu0 0.0
    %89 = vmatprep.subr.mxu0 0.0
    %90 = vmatpush1.msra.mxu0 0.0
    %91 = vmatprep.subr.mxu0 0.0
    %92 = vmatpush1.msra.mxu0 0.0
    %93 = vmatprep.subr.mxu0 0.0
    %94 = vmatpush1.msra.mxu0 0.0
    %95 = vmatprep.subr.mxu0 0.0
    %96 = vmatpush1.msra.mxu0 0.0
    %97 = vmatprep.subr.mxu0 0.0
    %98 = vmatpush1.msra.mxu0 0.0
    %99 = vmatprep.subr.mxu0 0.0
    %100 = vmatpush1.msra.mxu0 0.0
    %101 = vmatprep.subr.mxu0 0.0
    %102 = vmatpush1.msra.mxu0 0.0
    %103 = vmatprep.subr.mxu0 0.0
    %104 = vmatpush1.msra.mxu0 0.0
    %105 = vmatprep.subr.mxu0 0.0
    %106 = vmatpush1.msra.mxu0 0.0
    %107 = vmatprep.subr.mxu0 0.0
    %108 = vmatpush1.msra.mxu0 0.0
    %109 = vmatprep.subr.mxu0 0.0
    %110 = vmatpush1.msra.mxu0 0.0
    %111 = vmatprep.subr.mxu0 0.0
    %112 = vmatpush1.msra.mxu0 0.0
    %113 = vmatprep.subr.mxu0 0.0
    %114 = vmatpush1.msra.mxu0 0.0
    %115 = vmatprep.subr.mxu0 0.0
    %116 = vmatpush1.msra.mxu0 0.0
    %117 = vmatprep.subr.mxu0 0.0
    %118 = vmatpush1.msra.mxu0 0.0
    %119 = vmatprep.subr.mxu0 0.0
    %120 = vmatpush1.msra.mxu0 0.0
    %121 = vmatprep.mubr.f32.mxu0 0.0
    %122 = vmatmul.mubr.f32.gmra.mrb[0].mxu0 %v55
    %v123 = vpop.f32.mrb[0].mxu0
    %v124 = vadd.f32 %v51, %v123
    %v125 = vpop.f32.mrb[0].mxu0
    %126 = vdwg.mxu0
    %vm127 = vcmask 326656
    %128 = vst.msk [vmem:[#allocation7] sm:$0xff] %vm127, %v124
    // Predicated region
    $region22: #{tpu_custom_call.1} parent=1 // pred_check
      _
    $region23: #{tpu_custom_call.1} parent=1 // pred_check_branch
      %130 = sbr.rel (0) target = $region25
    $region24: #{tpu_custom_call.1} parent=1 // pred_region
      %s132 = ssub.s32 128, 128
      %133 = vsyncadd [#allocation4], %s132
      %s135 = sshll.u32 [#allocation7], 4
      %s136 = int_to_ptr.vmem [resolvable:$true] %s135
      %138 = dma.vmem_to_hbm [thread:$0]  %s136, 128, %s3, [#allocation4]
    $region25: #{tpu_custom_call.1} parent=1 // pred_fallthru
      _
    // Predicated region
    $region26: #{tpu_custom_call.1} parent=1 // pred_check
      _
    $region27: #{tpu_custom_call.1} parent=1 // pred_check_branch
      %140 = sbr.rel (0) target = $region29
    $region28: #{tpu_custom_call.1} parent=1 // pred_region
      %141 = dma.done [#allocation4], 128
    $region29: #{tpu_custom_call.1} parent=1 // pred_fallthru
      _
    %142 = vsyncpa [#allocation3], 1
    %143 = vsyncpa [#allocation6], 1
    %144 = vsyncpa [#allocation4], 1

</llo_original>
